<compile_context>
chip_gen: v6e
topology: v6e:2x2x1
jax: 0.10.0
libtpu: 0.0.40
codegen_flags: <defaults>
</compile_context>

<pallas_src>
import jax
import jax.numpy as jnp
from jax.experimental import pallas as pl
from jax.experimental.pallas import tpu as pltpu

IN = 4            # state dim (CartPole-style)
IN_PAD = 8        # padded input rows (sublane-aligned, zero rows -> exact)
H1 = 64           # fc1 logical width
H1_PAD = 128      # fc1 padded width (lane-/sublane-full)
H2 = 256          # fc2 width
OUT = 2           # action dim
TILE_M_MAX = 4096  # max batch rows per grid step (feature-major -> same cap on v5e/v6e/v7x)


def _mlp_kernel(x_ref, w1_ref, b1_ref, w2_ref, b2_ref, w3_ref, b3_ref, o_ref):
    # Feature-major: features on sublanes, batch on lanes (lane-dense in/out tiles).
    x = x_ref[...]                                                       # (8, TM) f32

    # fc1: (128, 8) @ (8, TM) on the MXU (tiny K, exact f32), bias broadcasts along lanes.
    h1 = jnp.dot(w1_ref[...], x, preferred_element_type=jnp.float32)     # (128, TM)
    h1 = jnp.maximum(h1 + b1_ref[...], 0.0)

    # fc2: dominant matmul — native bf16 MXU rate, f32 accumulation.
    h2 = jnp.dot(w2_ref[...], h1.astype(jnp.bfloat16),
                 preferred_element_type=jnp.float32)                     # (256, TM)
    h2 = jnp.maximum(h2 + b2_ref[...], 0.0)

    # fc3: (2, 256) @ (256, TM) MXU matmul -> lane-dense (2, TM) output (no XLU reductions).
    q = jnp.dot(w3_ref[...], h2, preferred_element_type=jnp.float32) + b3_ref[...]
    o_ref[...] = q.astype(o_ref.dtype)


def _round_up(n, m):
    return ((n + m - 1) // m) * m


def _cdiv(a, b):
    return (a + b - 1) // b


def _pick_grid(batch, tile_m_max=TILE_M_MAX):
    """Pick (tm, b_pad): tm is a lane-full multiple of 128 derived from a target step count
    (minimal tail padding); the grid gets an even number of steps (>= 2) whenever the batch
    spans more than one 128-lane tile, so v7x's two TensorCores stay balanced."""
    tile_m_max = max(128, (tile_m_max // 128) * 128)
    b128 = _round_up(batch, 128)
    if b128 <= 128:
        return 128, 128
    steps = _cdiv(b128, tile_m_max)
    steps += steps % 2                       # even step count for megacore balance
    steps = max(steps, 2)
    tm = min(tile_m_max, _round_up(_cdiv(batch, steps), 128))
    return tm, tm * steps


def pack_params(params):
    """One-time layout prep for the feature-major kernel (all zero-padding is exact)."""
    w1, b1, w2, b2, w3, b3 = params
    # fc1: transpose, pad out-features 64->128 and in-features 4->8.
    w1t = jnp.pad(w1.T, ((0, H1_PAD - H1), (0, IN_PAD - IN)))              # (128, 8) f32
    b1t = jnp.pad(b1.reshape(H1, 1), ((0, H1_PAD - H1), (0, 0)))           # (128, 1) f32
    # fc2: transpose, pad in-features 64->128, store bf16 for native-rate MXU.
    w2t = jnp.pad(w2.T, ((0, 0), (0, H1_PAD - H1))).astype(jnp.bfloat16)   # (256, 128) bf16
    b2t = b2.reshape(H2, 1)                                                # (256, 1) f32
    # fc3: transpose so q = w3t @ h2 is a lane-dense (2, TM) MXU matmul.
    w3t = w3.T                                                             # (2, 256) f32
    b3t = b3.reshape(OUT, 1)                                               # (2, 1) f32
    return (w1t, b1t, w2t, b2t, w3t, b3t)


def soft_q_forward(x, packed_params, tile_m_max=TILE_M_MAX):
    """Fused forward pass. x: (B, 4) float32 -> (B, 2) float32."""
    w1t, b1t, w2t, b2t, w3t, b3t = packed_params
    B = x.shape[0]
    tm, b_pad = _pick_grid(B, tile_m_max)

    # Feature-major input (IN_PAD, b_pad); zero rows/columns are exact and sliced off later.
    x_fm = jnp.pad(x.T, ((0, IN_PAD - IN), (0, b_pad - B)))

    const = lambda arr: pl.BlockSpec(arr.shape, lambda i: (0, 0))  # resident in VMEM, DMA'd once

    out_fm = pl.pallas_call(
        _mlp_kernel,
        out_shape=jax.ShapeDtypeStruct((OUT, b_pad), jnp.float32),
        grid=(b_pad // tm,),
        in_specs=[
            pl.BlockSpec((IN_PAD, tm), lambda i: (0, i)),          # x: tiled over batch (lanes)
            const(w1t), const(b1t),
            const(w2t), const(b2t),
            const(w3t), const(b3t),
        ],
        out_specs=pl.BlockSpec((OUT, tm), lambda i: (0, i)),       # lane-dense output tile
        compiler_params=pltpu.CompilerParams(
            dimension_semantics=("parallel",),                     # megacore split on v7x
            vmem_limit_bytes=32 * 1024 * 1024),
    )(x_fm, w1t, b1t, w2t, b2t, w3t, b3t)

    return out_fm[:, :B].T                                         # (B, 2)


def init_params(key):
    """Deterministic init mimicking torch.nn.Linear default U[-1/sqrt(fan_in), 1/sqrt(fan_in)].
    Weights stored as (in_features, out_features); biases kept 2-D (1, out_features)."""
    dims = [(IN, H1), (H1, H2), (H2, OUT)]
    keys = jax.random.split(key, 2 * len(dims))
    params = []
    for i, (fan_in, fan_out) in enumerate(dims):
        bound = 1.0 / (fan_in ** 0.5)
        w = jax.random.uniform(keys[2 * i], (fan_in, fan_out), jnp.float32,
                               minval=-bound, maxval=bound)
        b = jax.random.uniform(keys[2 * i + 1], (1, fan_out), jnp.float32,
                               minval=-bound, maxval=bound)
        params += [w, b]
    return tuple(params)


def reference_forward(x, params):
    w1, b1, w2, b2, w3, b3 = params
    h1 = jnp.maximum(x @ w1 + b1, 0.0)
    h2 = jnp.maximum(h1 @ w2 + b2, 0.0)
    return h2 @ w3 + b3


if __name__ == "__main__":
    key = jax.random.PRNGKey(0)
    pkey, xkey1, xkey2 = jax.random.split(key, 3)
    params = init_params(pkey)
    packed = pack_params(params)

    # Tolerances are loosened vs. the pure-f32 reference because fc2 runs in bf16
    # (f32 accumulation); observed error is ~1e-3 on O(0.1-1) Q-values.
    ATOL, RTOL = 3e-2, 3e-2

    # Tiny inference-style batch (single 128-lane tile, grid=1).
    B1 = 8
    x1 = jax.random.normal(xkey1, (B1, IN), jnp.float32)
    q1 = jax.block_until_ready(soft_q_forward(x1, packed))
    assert q1.shape == (B1, OUT)
    assert jnp.allclose(q1, reference_forward(x1, params), atol=ATOL, rtol=RTOL)

    # Batch exercising tail padding + an even multi-step grid (2 steps of tm=384).
    B2 = 600
    x2 = jax.random.normal(xkey2, (B2, IN), jnp.float32)
    q2 = jax.block_until_ready(soft_q_forward(x2, packed))
    assert q2.shape == (B2, OUT)
    assert jnp.allclose(q2, reference_forward(x2, params), atol=ATOL, rtol=RTOL)

    print("KERNEL_OK")
</pallas_src>

<mosaic_0001>
module attributes {stable_mosaic.version = 11 : i64} {
  func.func @_mlp_kernel(%arg0: i32, %arg1: memref<8x128xf32, #tpu.memory_space<vmem>>, %arg2: memref<128x8xf32, #tpu.memory_space<vmem>>, %arg3: memref<128x1xf32, #tpu.memory_space<vmem>>, %arg4: memref<256x128xbf16, #tpu.memory_space<vmem>>, %arg5: memref<256x1xf32, #tpu.memory_space<vmem>>, %arg6: memref<2x256xf32, #tpu.memory_space<vmem>>, %arg7: memref<2x1xf32, #tpu.memory_space<vmem>>, %arg8: memref<2x128xf32, #tpu.memory_space<vmem>>) attributes {dimension_semantics = [#tpu.dimension_semantics<parallel>], iteration_bounds = array<i64: 1>, scalar_prefetch = 0 : i64, scratch_operands = 0 : i64, tpu.core_type = #tpu.core_type<tc>, window_params = [{transform_indices = @transform_0, window_bounds = array<i64: 8, 128>}, {pipeline_mode = #tpu.pipeline_mode<synchronous>, transform_indices = @transform_1, window_bounds = array<i64: 128, 8>}, {pipeline_mode = #tpu.pipeline_mode<synchronous>, transform_indices = @transform_2, window_bounds = array<i64: 128, 1>}, {pipeline_mode = #tpu.pipeline_mode<synchronous>, transform_indices = @transform_3, window_bounds = array<i64: 256, 128>}, {pipeline_mode = #tpu.pipeline_mode<synchronous>, transform_indices = @transform_4, window_bounds = array<i64: 256, 1>}, {pipeline_mode = #tpu.pipeline_mode<synchronous>, transform_indices = @transform_5, window_bounds = array<i64: 2, 256>}, {pipeline_mode = #tpu.pipeline_mode<synchronous>, transform_indices = @transform_6, window_bounds = array<i64: 2, 1>}, {transform_indices = @transform_7, window_bounds = array<i64: 2, 128>}]} {
    %c0 = arith.constant 0 : index
    %c0_0 = arith.constant 0 : index
    %0 = vector.load %arg1[%c0, %c0_0] : memref<8x128xf32, #tpu.memory_space<vmem>>, vector<8x128xf32>
    %c0_1 = arith.constant 0 : index
    %c0_2 = arith.constant 0 : index
    %1 = vector.load %arg2[%c0_1, %c0_2] : memref<128x8xf32, #tpu.memory_space<vmem>>, vector<128x8xf32>
    %cst = arith.constant dense<0.000000e+00> : vector<128x128xf32>
    %2 = tpu.matmul %1, %0, %cst {dimension_numbers = #tpu.dot_dimension_numbers<[1], [0], [0], [1], [0, 0, 1, 1], [], []>} : vector<128x8xf32>, vector<8x128xf32>, vector<128x128xf32> -> vector<128x128xf32>
    %c0_3 = arith.constant 0 : index
    %c0_4 = arith.constant 0 : index
    %3 = vector.load %arg3[%c0_3, %c0_4] : memref<128x1xf32, #tpu.memory_space<vmem>>, vector<128x1xf32>
    %4 = vector.broadcast %3 : vector<128x1xf32> to vector<128x128xf32>
    %5 = arith.addf %2, %4 : vector<128x128xf32>
    %cst_5 = arith.constant 0.000000e+00 : f32
    %6 = vector.broadcast %cst_5 : f32 to vector<128x128xf32>
    %7 = arith.maximumf %5, %6 : vector<128x128xf32>
    %c0_6 = arith.constant 0 : index
    %c0_7 = arith.constant 0 : index
    %8 = vector.load %arg4[%c0_6, %c0_7] : memref<256x128xbf16, #tpu.memory_space<vmem>>, vector<256x128xbf16>
    %9 = arith.truncf %7 : vector<128x128xf32> to vector<128x128xbf16>
    %cst_8 = arith.constant dense<0.000000e+00> : vector<256x128xf32>
    %10 = tpu.matmul %8, %9, %cst_8 {dimension_numbers = #tpu.dot_dimension_numbers<[1], [0], [0], [1], [0, 0, 1, 1], [], []>} : vector<256x128xbf16>, vector<128x128xbf16>, vector<256x128xf32> -> vector<256x128xf32>
    %c0_9 = arith.constant 0 : index
    %c0_10 = arith.constant 0 : index
    %11 = vector.load %arg5[%c0_9, %c0_10] : memref<256x1xf32, #tpu.memory_space<vmem>>, vector<256x1xf32>
    %12 = vector.broadcast %11 : vector<256x1xf32> to vector<256x128xf32>
    %13 = arith.addf %10, %12 : vector<256x128xf32>
    %cst_11 = arith.constant 0.000000e+00 : f32
    %14 = vector.broadcast %cst_11 : f32 to vector<256x128xf32>
    %15 = arith.maximumf %13, %14 : vector<256x128xf32>
    %c0_12 = arith.constant 0 : index
    %c0_13 = arith.constant 0 : index
    %16 = vector.load %arg6[%c0_12, %c0_13] : memref<2x256xf32, #tpu.memory_space<vmem>>, vector<2x256xf32>
    %cst_14 = arith.constant dense<0.000000e+00> : vector<2x128xf32>
    %17 = tpu.matmul %16, %15, %cst_14 {dimension_numbers = #tpu.dot_dimension_numbers<[1], [0], [0], [1], [0, 0, 1, 1], [], []>} : vector<2x256xf32>, vector<256x128xf32>, vector<2x128xf32> -> vector<2x128xf32>
    %c0_15 = arith.constant 0 : index
    %c0_16 = arith.constant 0 : index
    %18 = vector.load %arg7[%c0_15, %c0_16] : memref<2x1xf32, #tpu.memory_space<vmem>>, vector<2x1xf32>
    %19 = vector.broadcast %18 : vector<2x1xf32> to vector<2x128xf32>
    %20 = arith.addf %17, %19 : vector<2x128xf32>
    %c0_17 = arith.constant 0 : index
    %c0_18 = arith.constant 0 : index
    %21 = vector.load %arg8[%c0_17, %c0_18] : memref<2x128xf32, #tpu.memory_space<vmem>>, vector<2x128xf32>
    tpu.vector_store %arg8[%c0_17, %c0_18], %20 {strides = array<i32>} : memref<2x128xf32, #tpu.memory_space<vmem>>, vector<2x128xf32>,
    return
  }
  func.func @transform_0(%arg0: i32) -> (i32, i32) {
    %c0_i32 = arith.constant 0 : i32
    %c0_i32_0 = arith.constant 0 : i32
    return %c0_i32, %arg0 : i32, i32
  }
  func.func @transform_1(%arg0: i32) -> (i32, i32) {
    %c0_i32 = arith.constant 0 : i32
    %c0_i32_0 = arith.constant 0 : i32
    %c0_i32_1 = arith.constant 0 : i32
    return %c0_i32, %c0_i32_0 : i32, i32
  }
  func.func @transform_2(%arg0: i32) -> (i32, i32) {
    %c0_i32 = arith.constant 0 : i32
    %c0_i32_0 = arith.constant 0 : i32
    %c0_i32_1 = arith.constant 0 : i32
    return %c0_i32, %c0_i32_0 : i32, i32
  }
  func.func @transform_3(%arg0: i32) -> (i32, i32) {
    %c0_i32 = arith.constant 0 : i32
    %c0_i32_0 = arith.constant 0 : i32
    %c0_i32_1 = arith.constant 0 : i32
    return %c0_i32, %c0_i32_0 : i32, i32
  }
  func.func @transform_4(%arg0: i32) -> (i32, i32) {
    %c0_i32 = arith.constant 0 : i32
    %c0_i32_0 = arith.constant 0 : i32
    %c0_i32_1 = arith.constant 0 : i32
    return %c0_i32, %c0_i32_0 : i32, i32
  }
  func.func @transform_5(%arg0: i32) -> (i32, i32) {
    %c0_i32 = arith.constant 0 : i32
    %c0_i32_0 = arith.constant 0 : i32
    %c0_i32_1 = arith.constant 0 : i32
    return %c0_i32, %c0_i32_0 : i32, i32
  }
  func.func @transform_6(%arg0: i32) -> (i32, i32) {
    %c0_i32 = arith.constant 0 : i32
    %c0_i32_0 = arith.constant 0 : i32
    %c0_i32_1 = arith.constant 0 : i32
    return %c0_i32, %c0_i32_0 : i32, i32
  }
  func.func @transform_7(%arg0: i32) -> (i32, i32) {
    %c0_i32 = arith.constant 0 : i32
    %c0_i32_0 = arith.constant 0 : i32
    return %c0_i32, %arg0 : i32, i32
  }
}

</mosaic_0001>

<llo_original>
// kernel: tpu_custom_call.1
$region0: #{tpu_custom_call.1}
  #allocation0 [shape = 'u32[]', space=smem, size = 0x4, offset = 0x4, fixed_abs, tag = 'smem constant byte address 0x4 - core index']
  #allocation1 [shape = 'u32[144,128]{1,0:T(1,128)}', space=vmem, size = 0x12000, scoped, tag = 'internal scratch']
  %s0 = inlined_call_operand.vmem [shape: f32[8,128], index: 0, kind: input, shape index: {}]
  %s1 = inlined_call_operand.vmem [shape: f32[128,8], index: 1, kind: input, shape index: {}]
  %s2 = inlined_call_operand.vmem [shape: f32[128,1], index: 2, kind: input, shape index: {}]
  %s3 = inlined_call_operand.vmem [shape: bf16[256,128], index: 3, kind: input, shape index: {}]
  %s4 = inlined_call_operand.vmem [shape: f32[256,1], index: 4, kind: input, shape index: {}]
  %s5 = inlined_call_operand.vmem [shape: f32[2,256], index: 5, kind: input, shape index: {}]
  %s6 = inlined_call_operand.vmem [shape: f32[2,1], index: 6, kind: input, shape index: {}]
  %s7 = inlined_call_operand.hbm [shape: f32[2,128], index: 7, kind: output, shape index: {}]
  %s8 = sld [smem:[#allocation0]]
  $region38: #{tpu_custom_call.1} parent=0
    _
  %s10 = ssub.s32 1, %s8
  %s11 = scalar_select 0, %s10, %s8
  $region1: #{tpu_custom_call.1} parent=0
    #allocation2 [shape = 'u8[1024]{0}', space=vmem, size = 0x400, scoped, tag = 'output window, operand 0, single buffered']
    #allocation3 [shape = 's32[1]{0}', space=sflag, size = 0x4, scoped, tag = 'scoped memory for tpu_custom_call.1']
    %12 = vsyncpa [#allocation3], 0
    // Predicated region
    $region2: #{tpu_custom_call.1} parent=1 // pred_check
      _
    $region3: #{tpu_custom_call.1} parent=1 // pred_check_branch
      %14 = sbr.rel (0) target = $region5
    $region4: #{tpu_custom_call.1} parent=1 // pred_region
      _
    $region5: #{tpu_custom_call.1} parent=1 // pred_fallthru
      _
    // Predicated region
    $region6: #{tpu_custom_call.1} parent=1 // pred_check
      _
    $region7: #{tpu_custom_call.1} parent=1 // pred_check_branch
      %16 = sbr.rel (0) target = $region9
    $region8: #{tpu_custom_call.1} parent=1 // pred_region
      _
    $region9: #{tpu_custom_call.1} parent=1 // pred_fallthru
      _
    // Predicated region
    $region10: #{tpu_custom_call.1} parent=1 // pred_check
      _
    $region11: #{tpu_custom_call.1} parent=1 // pred_check_branch
      %18 = sbr.rel (0) target = $region13
    $region12: #{tpu_custom_call.1} parent=1 // pred_region
      _
    $region13: #{tpu_custom_call.1} parent=1 // pred_fallthru
      _
    // Predicated region
    $region14: #{tpu_custom_call.1} parent=1 // pred_check
      _
    $region15: #{tpu_custom_call.1} parent=1 // pred_check_branch
      %20 = sbr.rel (0) target = $region17
    $region16: #{tpu_custom_call.1} parent=1 // pred_region
      _
    $region17: #{tpu_custom_call.1} parent=1 // pred_fallthru
      _
    // Predicated region
    $region18: #{tpu_custom_call.1} parent=1 // pred_check
      _
    $region19: #{tpu_custom_call.1} parent=1 // pred_check_branch
      %22 = sbr.rel (0) target = $region21
    $region20: #{tpu_custom_call.1} parent=1 // pred_region
      _
    $region21: #{tpu_custom_call.1} parent=1 // pred_fallthru
      _
    // Predicated region
    $region22: #{tpu_custom_call.1} parent=1 // pred_check
      _
    $region23: #{tpu_custom_call.1} parent=1 // pred_check_branch
      %24 = sbr.rel (0) target = $region25
    $region24: #{tpu_custom_call.1} parent=1 // pred_region
      _
    $region25: #{tpu_custom_call.1} parent=1 // pred_fallthru
      _
    // Predicated region
    $region26: #{tpu_custom_call.1} parent=1 // pred_check
      _
    $region27: #{tpu_custom_call.1} parent=1 // pred_check_branch
      %26 = sbr.rel (0) target = $region29
    $region28: #{tpu_custom_call.1} parent=1 // pred_region
      _
    $region29: #{tpu_custom_call.1} parent=1 // pred_fallthru
      _
    %v28 = vld [vmem:[%s0] sm:$0xff]
    %v29 = vld [vmem:[%s1] sm:$0xff]
    %v30 = vld [vmem:[%s1 + $0x8] sm:$0xff]
    %v31 = vld [vmem:[%s1 + $0x10] sm:$0xff]
    %v32 = vld [vmem:[%s1 + $0x18] sm:$0xff]
    %v33 = vld [vmem:[%s1 + $0x20] sm:$0xff]
    %v34 = vld [vmem:[%s1 + $0x28] sm:$0xff]
    %v35 = vld [vmem:[%s1 + $0x30] sm:$0xff]
    %v36 = vld [vmem:[%s1 + $0x38] sm:$0xff]
    %v37 = vld [vmem:[%s1 + $0x40] sm:$0xff]
    %v38 = vld [vmem:[%s1 + $0x48] sm:$0xff]
    %v39 = vld [vmem:[%s1 + $0x50] sm:$0xff]
    %v40 = vld [vmem:[%s1 + $0x58] sm:$0xff]
    %v41 = vld [vmem:[%s1 + $0x60] sm:$0xff]
    %v42 = vld [vmem:[%s1 + $0x68] sm:$0xff]
    %v43 = vld [vmem:[%s1 + $0x70] sm:$0xff]
    %v44 = vld [vmem:[%s1 + $0x78] sm:$0xff]
    %v45 = vld [vmem:[%s2] sm:$0xff]
    %v46 = vld [vmem:[%s2 + $0x8] sm:$0xff]
    %v47 = vld [vmem:[%s2 + $0x10] sm:$0xff]
    %v48 = vld [vmem:[%s2 + $0x18] sm:$0xff]
    %v49 = vld [vmem:[%s2 + $0x20] sm:$0xff]
    %v50 = vld [vmem:[%s2 + $0x28] sm:$0xff]
    %v51 = vld [vmem:[%s2 + $0x30] sm:$0xff]
    %v52 = vld [vmem:[%s2 + $0x38] sm:$0xff]
    %v53 = vld [vmem:[%s2 + $0x40] sm:$0xff]
    %v54 = vld [vmem:[%s2 + $0x48] sm:$0xff]
    %v55 = vld [vmem:[%s2 + $0x50] sm:$0xff]
    %v56 = vld [vmem:[%s2 + $0x58] sm:$0xff]
    %v57 = vld [vmem:[%s2 + $0x60] sm:$0xff]
    %v58 = vld [vmem:[%s2 + $0x68] sm:$0xff]
    %v59 = vld [vmem:[%s2 + $0x70] sm:$0xff]
    %v60 = vld [vmem:[%s2 + $0x78] sm:$0xff]
    %62 = vset.pattern.permute.xlu0 0
    %63 = vperm.xlu0 %62, %v45
    %v64 = vpop.permute.xlu0 %63
    %67 = vset.pattern.permute.xlu0 0
    %68 = vperm.xlu0 %67, %v46
    %v69 = vpop.permute.xlu0 %68
    %72 = vset.pattern.permute.xlu0 0
    %73 = vperm.xlu0 %72, %v47
    %v74 = vpop.permute.xlu0 %73
    %77 = vset.pattern.permute.xlu0 0
    %78 = vperm.xlu0 %77, %v48
    %v79 = vpop.permute.xlu0 %78
    %82 = vset.pattern.permute.xlu0 0
    %83 = vperm.xlu0 %82, %v49
    %v84 = vpop.permute.xlu0 %83
    %87 = vset.pattern.permute.xlu0 0
    %88 = vperm.xlu0 %87, %v50
    %v89 = vpop.permute.xlu0 %88
    %92 = vset.pattern.permute.xlu0 0
    %93 = vperm.xlu0 %92, %v51
    %v94 = vpop.permute.xlu0 %93
    %97 = vset.pattern.permute.xlu0 0
    %98 = vperm.xlu0 %97, %v52
    %v99 = vpop.permute.xlu0 %98
    %102 = vset.pattern.permute.xlu0 0
    %103 = vperm.xlu0 %102, %v53
    %v104 = vpop.permute.xlu0 %103
    %107 = vset.pattern.permute.xlu0 0
    %108 = vperm.xlu0 %107, %v54
    %v109 = vpop.permute.xlu0 %108
    %112 = vset.pattern.permute.xlu0 0
    %113 = vperm.xlu0 %112, %v55
    %v114 = vpop.permute.xlu0 %113
    %117 = vset.pattern.permute.xlu0 0
    %118 = vperm.xlu0 %117, %v56
    %v119 = vpop.permute.xlu0 %118
    %122 = vset.pattern.permute.xlu0 0
    %123 = vperm.xlu0 %122, %v57
    %v124 = vpop.permute.xlu0 %123
    %127 = vset.pattern.permute.xlu0 0
    %128 = vperm.xlu0 %127, %v58
    %v129 = vpop.permute.xlu0 %128
    %132 = vset.pattern.permute.xlu0 0
    %133 = vperm.xlu0 %132, %v59
    %v134 = vpop.permute.xlu0 %133
    %137 = vset.pattern.permute.xlu0 0
    %138 = vperm.xlu0 %137, %v60
    %v139 = vpop.permute.xlu0 %138
    %vm141 = vcmask 64512
    %v143 = vsel %vm141, %v29, 0
    %v146 = vsel %vm141, %v30, 0
    %v149 = vsel %vm141, %v31, 0
    %v152 = vsel %vm141, %v32, 0
    %v155 = vsel %vm141, %v33, 0
    %v158 = vsel %vm141, %v34, 0
    %v161 = vsel %vm141, %v35, 0
    %v164 = vsel %vm141, %v36, 0
    %v167 = vsel %vm141, %v37, 0
    %v170 = vsel %vm141, %v38, 0
    %v173 = vsel %vm141, %v39, 0
    %v176 = vsel %vm141, %v40, 0
    %v179 = vsel %vm141, %v41, 0
    %v182 = vsel %vm141, %v42, 0
    %v185 = vsel %vm141, %v43, 0
    %v188 = vsel %vm141, %v44, 0
    %190 = vmatprep.subr.mxu0 0.0
    %191 = vmatpush1.msra.mxu0 0.0
    %192 = vmatprep.subr.mxu0 0.0
    %193 = vmatpush1.msra.mxu0 0.0
    %194 = vmatprep.subr.mxu0 0.0
    %195 = vmatpush1.msra.mxu0 0.0
    %196 = vmatprep.subr.mxu0 0.0
    %197 = vmatpush1.msra.mxu0 0.0
    %198 = vmatprep.subr.mxu0 0.0
    %199 = vmatpush1.msra.mxu0 0.0
    %200 = vmatprep.subr.mxu0 0.0
    %201 = vmatpush1.msra.mxu0 0.0
    %202 = vmatprep.subr.mxu0 0.0
    %203 = vmatpush1.msra.mxu0 0.0
    %204 = vmatprep.subr.mxu0 0.0
    %205 = vmatpush1.msra.mxu0 0.0
    %206 = vmatprep.subr.mxu0 0.0
    %207 = vmatpush1.msra.mxu0 0.0
    %208 = vmatprep.subr.mxu0 0.0
    %209 = vmatpush1.msra.mxu0 0.0
    %210 = vmatprep.subr.mxu0 0.0
    %211 = vmatpush1.msra.mxu0 0.0
    %212 = vmatprep.subr.mxu0 0.0
    %213 = vmatpush1.msra.mxu0 0.0
    %214 = vmatprep.subr.mxu0 0.0
    %215 = vmatpush1.msra.mxu0 0.0
    %216 = vmatprep.subr.mxu0 0.0
    %217 = vmatpush1.msra.mxu0 0.0
    %218 = vmatprep.subr.mxu0 0.0
    %219 = vmatpush1.msra.mxu0 0.0
    %220 = vmatprep.subr.mxu0 0.0
    %221 = vmatpush1.msra.mxu0 %v28
    %222 = vmatprep.subr.mxu0 0.0
    %223 = vmatpush2.msra.mxu0 0.0
    %224 = vmatprep.subr.mxu0 0.0
    %225 = vmatpush2.msra.mxu0 0.0
    %226 = vmatprep.subr.mxu0 0.0
    %227 = vmatpush2.msra.mxu0 0.0
    %228 = vmatprep.subr.mxu0 0.0
    %229 = vmatpush2.msra.mxu0 0.0
    %230 = vmatprep.subr.mxu0 0.0
    %231 = vmatpush2.msra.mxu0 0.0
    %232 = vmatprep.subr.mxu0 0.0
    %233 = vmatpush2.msra.mxu0 0.0
    %234 = vmatprep.subr.mxu0 0.0
    %235 = vmatpush2.msra.mxu0 0.0
    %236 = vmatprep.subr.mxu0 0.0
    %237 = vmatpush2.msra.mxu0 0.0
    %238 = vmatprep.subr.mxu0 0.0
    %239 = vmatpush2.msra.mxu0 0.0
    %240 = vmatprep.subr.mxu0 0.0
    %241 = vmatpush2.msra.mxu0 0.0
    %242 = vmatprep.subr.mxu0 0.0
    %243 = vmatpush2.msra.mxu0 0.0
    %244 = vmatprep.subr.mxu0 0.0
    %245 = vmatpush2.msra.mxu0 0.0
    %246 = vmatprep.subr.mxu0 0.0
    %247 = vmatpush2.msra.mxu0 0.0
    %248 = vmatprep.subr.mxu0 0.0
    %249 = vmatpush2.msra.mxu0 0.0
    %250 = vmatprep.subr.mxu0 0.0
    %251 = vmatpush2.msra.mxu0 0.0
    %252 = vmatprep.subr.mxu0 0.0
    %253 = vmatpush2.msra.mxu0 0.0
    %254 = vmatprep.mubr.f32.mxu0 0.0
    %255 = vmatmul.mubr.f32.gmra.mxu0 %v143
    %v256 = vpop.f32.mrf.mxu0
    %v257 = vadd.f32 %v64, %v256
    %v258 = vpop.f32.mrf.mxu0
    %259 = vmatprep.mubr.f32.mxu0 0.0
    %260 = vmatmul.mubr.f32.gmra.mxu0 %v146
    %v261 = vpop.f32.mrf.mxu0
    %v262 = vadd.f32 %v69, %v261
    %v263 = vpop.f32.mrf.mxu0
    %264 = vmatprep.mubr.f32.mxu0 0.0
    %265 = vmatmul.mubr.f32.gmra.mxu0 %v149
    %v266 = vpop.f32.mrf.mxu0
    %v267 = vadd.f32 %v74, %v266
    %v268 = vpop.f32.mrf.mxu0
    %269 = vmatprep.mubr.f32.mxu0 0.0
    %270 = vmatmul.mubr.f32.gmra.mxu0 %v152
    %v271 = vpop.f32.mrf.mxu0
    %v272 = vadd.f32 %v79, %v271
    %v273 = vpop.f32.mrf.mxu0
    %274 = vmatprep.mubr.f32.mxu0 0.0
    %275 = vmatmul.mubr.f32.gmra.mxu0 %v155
    %v276 = vpop.f32.mrf.mxu0
    %v277 = vadd.f32 %v84, %v276
    %v278 = vpop.f32.mrf.mxu0
    %279 = vmatprep.mubr.f32.mxu0 0.0
    %280 = vmatmul.mubr.f32.gmra.mxu0 %v158
    %v281 = vpop.f32.mrf.mxu0
    %v282 = vadd.f32 %v89, %v281
    %v283 = vpop.f32.mrf.mxu0
    %284 = vmatprep.mubr.f32.mxu0 0.0
    %285 = vmatmul.mubr.f32.gmra.mxu0 %v161
    %v286 = vpop.f32.mrf.mxu0
    %v287 = vadd.f32 %v94, %v286
    %v288 = vpop.f32.mrf.mxu0
    %289 = vmatprep.mubr.f32.mxu0 0.0
    %290 = vmatmul.mubr.f32.gmra.mxu0 %v164
    %v291 = vpop.f32.mrf.mxu0
    %v292 = vadd.f32 %v99, %v291
    %v293 = vpop.f32.mrf.mxu0
    %294 = vmatprep.mubr.f32.mxu0 0.0
    %295 = vmatmul.mubr.f32.gmra.mxu0 %v167
    %v296 = vpop.f32.mrf.mxu0
    %v297 = vadd.f32 %v104, %v296
    %v298 = vpop.f32.mrf.mxu0
    %299 = vmatprep.mubr.f32.mxu0 0.0
    %300 = vmatmul.mubr.f32.gmra.mxu0 %v170
    %v301 = vpop.f32.mrf.mxu0
    %v302 = vadd.f32 %v109, %v301
    %v303 = vpop.f32.mrf.mxu0
    %304 = vmatprep.mubr.f32.mxu0 0.0
    %305 = vmatmul.mubr.f32.gmra.mxu0 %v173
    %v306 = vpop.f32.mrf.mxu0
    %v307 = vadd.f32 %v114, %v306
    %v308 = vpop.f32.mrf.mxu0
    %309 = vmatprep.mubr.f32.mxu0 0.0
    %310 = vmatmul.mubr.f32.gmra.mxu0 %v176
    %v311 = vpop.f32.mrf.mxu0
    %v312 = vadd.f32 %v119, %v311
    %v313 = vpop.f32.mrf.mxu0
    %314 = vmatprep.mubr.f32.mxu0 0.0
    %315 = vmatmul.mubr.f32.gmra.mxu0 %v179
    %v316 = vpop.f32.mrf.mxu0
    %v317 = vadd.f32 %v124, %v316
    %v318 = vpop.f32.mrf.mxu0
    %319 = vmatprep.mubr.f32.mxu0 0.0
    %320 = vmatmul.mubr.f32.gmra.mxu0 %v182
    %v321 = vpop.f32.mrf.mxu0
    %v322 = vadd.f32 %v129, %v321
    %v323 = vpop.f32.mrf.mxu0
    %324 = vmatprep.mubr.f32.mxu0 0.0
    %325 = vmatmul.mubr.f32.gmra.mxu0 %v185
    %v326 = vpop.f32.mrf.mxu0
    %v327 = vadd.f32 %v134, %v326
    %v328 = vpop.f32.mrf.mxu0
    %329 = vmatprep.mubr.f32.mxu0 0.0
    %330 = vmatmul.mubr.f32.gmra.mxu0 %v188
    %v331 = vpop.f32.mrf.mxu0
    %v332 = vadd.f32 %v139, %v331
    %v333 = vpop.f32.mrf.mxu0
    %334 = vdwg.mxu0
    %v335 = vmax.f32 %v257, 0.0
    %v336 = vmax.f32 %v262, 0.0
    %v337 = vmax.f32 %v267, 0.0
    %v338 = vmax.f32 %v272, 0.0
    %v339 = vmax.f32 %v277, 0.0
    %v340 = vmax.f32 %v282, 0.0
    %v341 = vmax.f32 %v287, 0.0
    %v342 = vmax.f32 %v292, 0.0
    %v343 = vmax.f32 %v297, 0.0
    %v344 = vmax.f32 %v302, 0.0
    %v345 = vmax.f32 %v307, 0.0
    %v346 = vmax.f32 %v312, 0.0
    %v347 = vmax.f32 %v317, 0.0
    %v348 = vmax.f32 %v322, 0.0
    %v349 = vmax.f32 %v327, 0.0
    %v350 = vmax.f32 %v332, 0.0
    %v351 = vld [vmem:[%s3] sm:$0xf]
    %v352 = vld [vmem:[%s3 + $0x4] sm:$0xf]
    %v353 = vld [vmem:[%s3 + $0x8] sm:$0xf]
    %v354 = vld [vmem:[%s3 + $0xc] sm:$0xf]
    %v355 = vld [vmem:[%s3 + $0x10] sm:$0xf]
    %v356 = vld [vmem:[%s3 + $0x14] sm:$0xf]
    %v357 = vld [vmem:[%s3 + $0x18] sm:$0xf]
    %v358 = vld [vmem:[%s3 + $0x1c] sm:$0xf]
    %v359 = vld [vmem:[%s3 + $0x20] sm:$0xf]
    %v360 = vld [vmem:[%s3 + $0x24] sm:$0xf]
    %v361 = vld [vmem:[%s3 + $0x28] sm:$0xf]
    %v362 = vld [vmem:[%s3 + $0x2c] sm:$0xf]
    %v363 = vld [vmem:[%s3 + $0x30] sm:$0xf]
    %v364 = vld [vmem:[%s3 + $0x34] sm:$0xf]
    %v365 = vld [vmem:[%s3 + $0x38] sm:$0xf]
    %v366 = vld [vmem:[%s3 + $0x3c] sm:$0xf]
    %v367 = vld [vmem:[%s3 + $0x40] sm:$0xf]
    %v368 = vld [vmem:[%s3 + $0x44] sm:$0xf]
    %v369 = vld [vmem:[%s3 + $0x48] sm:$0xf]
    %v370 = vld [vmem:[%s3 + $0x4c] sm:$0xf]
    %v371 = vld [vmem:[%s3 + $0x50] sm:$0xf]
    %v372 = vld [vmem:[%s3 + $0x54] sm:$0xf]
    %v373 = vld [vmem:[%s3 + $0x58] sm:$0xf]
    %v374 = vld [vmem:[%s3 + $0x5c] sm:$0xf]
    %v375 = vld [vmem:[%s3 + $0x60] sm:$0xf]
    %v376 = vld [vmem:[%s3 + $0x64] sm:$0xf]
    %v377 = vld [vmem:[%s3 + $0x68] sm:$0xf]
    %v378 = vld [vmem:[%s3 + $0x6c] sm:$0xf]
    %v379 = vld [vmem:[%s3 + $0x70] sm:$0xf]
    %v380 = vld [vmem:[%s3 + $0x74] sm:$0xf]
    %v381 = vld [vmem:[%s3 + $0x78] sm:$0xf]
    %v382 = vld [vmem:[%s3 + $0x7c] sm:$0xf]
    %v383 = vpack.c.bf16 %v336, %v335
    %v384 = vpack.c.bf16 %v338, %v337
    %v385 = vpack.c.bf16 %v340, %v339
    %v386 = vpack.c.bf16 %v342, %v341
    %v387 = vpack.c.bf16 %v344, %v343
    %v388 = vpack.c.bf16 %v346, %v345
    %v389 = vpack.c.bf16 %v348, %v347
    %v390 = vpack.c.bf16 %v350, %v349
    %v391 = vld [vmem:[%s4] sm:$0xff]
    %v392 = vld [vmem:[%s4 + $0x8] sm:$0xff]
    %v393 = vld [vmem:[%s4 + $0x10] sm:$0xff]
    %v394 = vld [vmem:[%s4 + $0x18] sm:$0xff]
    %v395 = vld [vmem:[%s4 + $0x20] sm:$0xff]
    %v396 = vld [vmem:[%s4 + $0x28] sm:$0xff]
    %v397 = vld [vmem:[%s4 + $0x30] sm:$0xff]
    %v398 = vld [vmem:[%s4 + $0x38] sm:$0xff]
    %v399 = vld [vmem:[%s4 + $0x40] sm:$0xff]
    %v400 = vld [vmem:[%s4 + $0x48] sm:$0xff]
    %v401 = vld [vmem:[%s4 + $0x50] sm:$0xff]
    %v402 = vld [vmem:[%s4 + $0x58] sm:$0xff]
    %v403 = vld [vmem:[%s4 + $0x60] sm:$0xff]
    %v404 = vld [vmem:[%s4 + $0x68] sm:$0xff]
    %v405 = vld [vmem:[%s4 + $0x70] sm:$0xff]
    %v406 = vld [vmem:[%s4 + $0x78] sm:$0xff]
    %v407 = vld [vmem:[%s4 + $0x80] sm:$0xff]
    %v408 = vld [vmem:[%s4 + $0x88] sm:$0xff]
    %v409 = vld [vmem:[%s4 + $0x90] sm:$0xff]
    %v410 = vld [vmem:[%s4 + $0x98] sm:$0xff]
    %v411 = vld [vmem:[%s4 + $0xa0] sm:$0xff]
    %v412 = vld [vmem:[%s4 + $0xa8] sm:$0xff]
    %v413 = vld [vmem:[%s4 + $0xb0] sm:$0xff]
    %v414 = vld [vmem:[%s4 + $0xb8] sm:$0xff]
    %v415 = vld [vmem:[%s4 + $0xc0] sm:$0xff]
    %v416 = vld [vmem:[%s4 + $0xc8] sm:$0xff]
    %v417 = vld [vmem:[%s4 + $0xd0] sm:$0xff]
    %v418 = vld [vmem:[%s4 + $0xd8] sm:$0xff]
    %v419 = vld [vmem:[%s4 + $0xe0] sm:$0xff]
    %v420 = vld [vmem:[%s4 + $0xe8] sm:$0xff]
    %v421 = vld [vmem:[%s4 + $0xf0] sm:$0xff]
    %v422 = vld [vmem:[%s4 + $0xf8] sm:$0xff]
    %424 = vset.pattern.permute.xlu0 0
    %425 = vperm.xlu0 %424, %v391
    %v426 = vpop.permute.xlu0 %425
    %429 = vset.pattern.permute.xlu0 0
    %430 = vperm.xlu0 %429, %v392
    %v431 = vpop.permute.xlu0 %430
    %434 = vset.pattern.permute.xlu0 0
    %435 = vperm.xlu0 %434, %v393
    %v436 = vpop.permute.xlu0 %435
    %439 = vset.pattern.permute.xlu0 0
    %440 = vperm.xlu0 %439, %v394
    %v441 = vpop.permute.xlu0 %440
    %444 = vset.pattern.permute.xlu0 0
    %445 = vperm.xlu0 %444, %v395
    %v446 = vpop.permute.xlu0 %445
    %449 = vset.pattern.permute.xlu0 0
    %450 = vperm.xlu0 %449, %v396
    %v451 = vpop.permute.xlu0 %450
    %454 = vset.pattern.permute.xlu0 0
    %455 = vperm.xlu0 %454, %v397
    %v456 = vpop.permute.xlu0 %455
    %459 = vset.pattern.permute.xlu0 0
    %460 = vperm.xlu0 %459, %v398
    %v461 = vpop.permute.xlu0 %460
    %464 = vset.pattern.permute.xlu0 0
    %465 = vperm.xlu0 %464, %v399
    %v466 = vpop.permute.xlu0 %465
    %469 = vset.pattern.permute.xlu0 0
    %470 = vperm.xlu0 %469, %v400
    %v471 = vpop.permute.xlu0 %470
    %474 = vset.pattern.permute.xlu0 0
    %475 = vperm.xlu0 %474, %v401
    %v476 = vpop.permute.xlu0 %475
    %479 = vset.pattern.permute.xlu0 0
    %480 = vperm.xlu0 %479, %v402
    %v481 = vpop.permute.xlu0 %480
    %484 = vset.pattern.permute.xlu0 0
    %485 = vperm.xlu0 %484, %v403
    %v486 = vpop.permute.xlu0 %485
    %489 = vset.pattern.permute.xlu0 0
    %490 = vperm.xlu0 %489, %v404
    %v491 = vpop.permute.xlu0 %490
    %494 = vset.pattern.permute.xlu0 0
    %495 = vperm.xlu0 %494, %v405
    %v496 = vpop.permute.xlu0 %495
    %499 = vset.pattern.permute.xlu0 0
    %500 = vperm.xlu0 %499, %v406
    %v501 = vpop.permute.xlu0 %500
    %504 = vset.pattern.permute.xlu0 0
    %505 = vperm.xlu0 %504, %v407
    %v506 = vpop.permute.xlu0 %505
    %509 = vset.pattern.permute.xlu0 0
    %510 = vperm.xlu0 %509, %v408
    %v511 = vpop.permute.xlu0 %510
    %514 = vset.pattern.permute.xlu0 0
    %515 = vperm.xlu0 %514, %v409
    %v516 = vpop.permute.xlu0 %515
    %519 = vset.pattern.permute.xlu0 0
    %520 = vperm.xlu0 %519, %v410
    %v521 = vpop.permute.xlu0 %520
    %524 = vset.pattern.permute.xlu0 0
    %525 = vperm.xlu0 %524, %v411
    %v526 = vpop.permute.xlu0 %525
    %529 = vset.pattern.permute.xlu0 0
    %530 = vperm.xlu0 %529, %v412
    %v531 = vpop.permute.xlu0 %530
    %534 = vset.pattern.permute.xlu0 0
    %535 = vperm.xlu0 %534, %v413
    %v536 = vpop.permute.xlu0 %535
    %539 = vset.pattern.permute.xlu0 0
    %540 = vperm.xlu0 %539, %v414
    %v541 = vpop.permute.xlu0 %540
    %544 = vset.pattern.permute.xlu0 0
    %545 = vperm.xlu0 %544, %v415
    %v546 = vpop.permute.xlu0 %545
    %549 = vset.pattern.permute.xlu0 0
    %550 = vperm.xlu0 %549, %v416
    %v551 = vpop.permute.xlu0 %550
    %554 = vset.pattern.permute.xlu0 0
    %555 = vperm.xlu0 %554, %v417
    %v556 = vpop.permute.xlu0 %555
    %559 = vset.pattern.permute.xlu0 0
    %560 = vperm.xlu0 %559, %v418
    %v561 = vpop.permute.xlu0 %560
    %564 = vset.pattern.permute.xlu0 0
    %565 = vperm.xlu0 %564, %v419
    %v566 = vpop.permute.xlu0 %565
    %569 = vset.pattern.permute.xlu0 0
    %570 = vperm.xlu0 %569, %v420
    %v571 = vpop.permute.xlu0 %570
    %574 = vset.pattern.permute.xlu0 0
    %575 = vperm.xlu0 %574, %v421
    %v576 = vpop.permute.xlu0 %575
    %579 = vset.pattern.permute.xlu0 0
    %580 = vperm.xlu0 %579, %v422
    %v581 = vpop.permute.xlu0 %580
    %v615 = vunpack.c.l.b16 %v351
    %v616 = vunpack.c.l.b16 %v352
    %v617 = vunpack.c.l.b16 %v353
    %v618 = vunpack.c.l.b16 %v354
    %v619 = vunpack.c.l.b16 %v355
    %v620 = vunpack.c.l.b16 %v356
    %v621 = vunpack.c.l.b16 %v357
    %v622 = vunpack.c.l.b16 %v358
    %v623 = vunpack.c.l.b16 %v359
    %v624 = vunpack.c.l.b16 %v360
    %v625 = vunpack.c.l.b16 %v361
    %v626 = vunpack.c.l.b16 %v362
    %v627 = vunpack.c.l.b16 %v363
    %v628 = vunpack.c.l.b16 %v364
    %v629 = vunpack.c.l.b16 %v365
    %v630 = vunpack.c.l.b16 %v366
    %v631 = vunpack.c.l.b16 %v367
    %v632 = vunpack.c.l.b16 %v368
    %v633 = vunpack.c.l.b16 %v369
    %v634 = vunpack.c.l.b16 %v370
    %v635 = vunpack.c.l.b16 %v371
    %v636 = vunpack.c.l.b16 %v372
    %v637 = vunpack.c.l.b16 %v373
    %v638 = vunpack.c.l.b16 %v374
    %v639 = vunpack.c.l.b16 %v375
    %v640 = vunpack.c.l.b16 %v376
    %v641 = vunpack.c.l.b16 %v377
    %v642 = vunpack.c.l.b16 %v378
    %v643 = vunpack.c.l.b16 %v379
    %v644 = vunpack.c.l.b16 %v380
    %v645 = vunpack.c.l.b16 %v381
    %v646 = vunpack.c.l.b16 %v382
    %v647 = vpack.c.b16 %v616, %v615
    %v648 = vpack.c.b16 %v618, %v617
    %v649 = vpack.c.b16 %v620, %v619
    %v650 = vpack.c.b16 %v622, %v621
    %v651 = vpack.c.b16 %v624, %v623
    %v652 = vpack.c.b16 %v626, %v625
    %v653 = vpack.c.b16 %v628, %v627
    %v654 = vpack.c.b16 %v630, %v629
    %v655 = vpack.c.b16 %v632, %v631
    %v656 = vpack.c.b16 %v634, %v633
    %v657 = vpack.c.b16 %v636, %v635
    %v658 = vpack.c.b16 %v638, %v637
    %v659 = vpack.c.b16 %v640, %v639
    %v660 = vpack.c.b16 %v642, %v641
    %v661 = vpack.c.b16 %v644, %v643
    %v662 = vpack.c.b16 %v646, %v645
    %679 = vmatprep.subr.bf16.mxu0 0
    %680 = vmatpush1.bf16.msra.mxu0 %v390
    %681 = vmatprep.subr.bf16.mxu0 0
    %682 = vmatpush1.bf16.msra.mxu0 %v389
    %683 = vmatprep.subr.bf16.mxu0 0
    %684 = vmatpush1.bf16.msra.mxu0 %v388
    %685 = vmatprep.subr.bf16.mxu0 0
    %686 = vmatpush1.bf16.msra.mxu0 %v387
    %687 = vmatprep.subr.bf16.mxu0 0
    %688 = vmatpush1.bf16.msra.mxu0 %v386
    %689 = vmatprep.subr.bf16.mxu0 0
    %690 = vmatpush1.bf16.msra.mxu0 %v385
    %691 = vmatprep.subr.bf16.mxu0 0
    %692 = vmatpush1.bf16.msra.mxu0 %v384
    %693 = vmatprep.subr.bf16.mxu0 0
    %694 = vmatpush1.bf16.msra.mxu0 %v383
    %695 = vmatprep.subr.bf16.mxu0 0
    %696 = vmatpush2.bf16.msra.mxu0 0
    %697 = vmatprep.subr.bf16.mxu0 0
    %698 = vmatpush2.bf16.msra.mxu0 0
    %699 = vmatprep.subr.bf16.mxu0 0
    %700 = vmatpush2.bf16.msra.mxu0 0
    %701 = vmatprep.subr.bf16.mxu0 0
    %702 = vmatpush2.bf16.msra.mxu0 0
    %703 = vmatprep.subr.bf16.mxu0 0
    %704 = vmatpush2.bf16.msra.mxu0 0
    %705 = vmatprep.subr.bf16.mxu0 0
    %706 = vmatpush2.bf16.msra.mxu0 0
    %707 = vmatprep.subr.bf16.mxu0 0
    %708 = vmatpush2.bf16.msra.mxu0 0
    %709 = vmatprep.subr.bf16.mxu0 0
    %710 = vmatpush2.bf16.msra.mxu0 0
    %711 = vmatprep.mubr.bf16.mxu0 0
    %712 = vmatmul.mubr.bf16.gmra.mxu0 %v647
    %v713 = vpop.f32.mrf.mxu0
    %v714 = vadd.f32 %v426, %v713
    %v715 = vpop.f32.mrf.mxu0
    %v716 = vpop.f32.mrf.mxu0
    %v717 = vadd.f32 %v431, %v716
    %v718 = vpop.f32.mrf.mxu0
    %719 = vmatprep.mubr.bf16.mxu0 0
    %720 = vmatmul.mubr.bf16.gmra.mxu0 %v648
    %v721 = vpop.f32.mrf.mxu0
    %v722 = vadd.f32 %v436, %v721
    %v723 = vpop.f32.mrf.mxu0
    %v724 = vpop.f32.mrf.mxu0
    %v725 = vadd.f32 %v441, %v724
    %v726 = vpop.f32.mrf.mxu0
    %727 = vmatprep.mubr.bf16.mxu0 0
    %728 = vmatmul.mubr.bf16.gmra.mxu0 %v649
    %v729 = vpop.f32.mrf.mxu0
    %v730 = vadd.f32 %v446, %v729
    %v731 = vpop.f32.mrf.mxu0
    %v732 = vpop.f32.mrf.mxu0
    %v733 = vadd.f32 %v451, %v732
    %v734 = vpop.f32.mrf.mxu0
    %735 = vmatprep.mubr.bf16.mxu0 0
    %736 = vmatmul.mubr.bf16.gmra.mxu0 %v650
    %v737 = vpop.f32.mrf.mxu0
    %v738 = vadd.f32 %v456, %v737
    %v739 = vpop.f32.mrf.mxu0
    %v740 = vpop.f32.mrf.mxu0
    %v741 = vadd.f32 %v461, %v740
    %v742 = vpop.f32.mrf.mxu0
    %743 = vmatprep.mubr.bf16.mxu0 0
    %744 = vmatmul.mubr.bf16.gmra.mxu0 %v651
    %v745 = vpop.f32.mrf.mxu0
    %v746 = vadd.f32 %v466, %v745
    %v747 = vpop.f32.mrf.mxu0
    %v748 = vpop.f32.mrf.mxu0
    %v749 = vadd.f32 %v471, %v748
    %v750 = vpop.f32.mrf.mxu0
    %751 = vmatprep.mubr.bf16.mxu0 0
    %752 = vmatmul.mubr.bf16.gmra.mxu0 %v652
    %v753 = vpop.f32.mrf.mxu0
    %v754 = vadd.f32 %v476, %v753
    %v755 = vpop.f32.mrf.mxu0
    %v756 = vpop.f32.mrf.mxu0
    %v757 = vadd.f32 %v481, %v756
    %v758 = vpop.f32.mrf.mxu0
    %759 = vmatprep.mubr.bf16.mxu0 0
    %760 = vmatmul.mubr.bf16.gmra.mxu0 %v653
    %v761 = vpop.f32.mrf.mxu0
    %v762 = vadd.f32 %v486, %v761
    %v763 = vpop.f32.mrf.mxu0
    %v764 = vpop.f32.mrf.mxu0
    %v765 = vadd.f32 %v491, %v764
    %v766 = vpop.f32.mrf.mxu0
    %767 = vmatprep.mubr.bf16.mxu0 0
    %768 = vmatmul.mubr.bf16.gmra.mxu0 %v654
    %v769 = vpop.f32.mrf.mxu0
    %v770 = vadd.f32 %v496, %v769
    %v771 = vpop.f32.mrf.mxu0
    %v772 = vpop.f32.mrf.mxu0
    %v773 = vadd.f32 %v501, %v772
    %v774 = vpop.f32.mrf.mxu0
    %775 = vmatprep.mubr.bf16.mxu0 0
    %776 = vmatmul.mubr.bf16.gmra.mxu0 %v655
    %v777 = vpop.f32.mrf.mxu0
    %v778 = vadd.f32 %v506, %v777
    %v779 = vpop.f32.mrf.mxu0
    %v780 = vpop.f32.mrf.mxu0
    %v781 = vadd.f32 %v511, %v780
    %v782 = vpop.f32.mrf.mxu0
    %783 = vmatprep.mubr.bf16.mxu0 0
    %784 = vmatmul.mubr.bf16.gmra.mxu0 %v656
    %v785 = vpop.f32.mrf.mxu0
    %v786 = vadd.f32 %v516, %v785
    %v787 = vpop.f32.mrf.mxu0
    %v788 = vpop.f32.mrf.mxu0
    %v789 = vadd.f32 %v521, %v788
    %v790 = vpop.f32.mrf.mxu0
    %791 = vmatprep.mubr.bf16.mxu0 0
    %792 = vmatmul.mubr.bf16.gmra.mxu0 %v657
    %v793 = vpop.f32.mrf.mxu0
    %v794 = vadd.f32 %v526, %v793
    %v795 = vpop.f32.mrf.mxu0
    %v796 = vpop.f32.mrf.mxu0
    %v797 = vadd.f32 %v531, %v796
    %v798 = vpop.f32.mrf.mxu0
    %799 = vmatprep.mubr.bf16.mxu0 0
    %800 = vmatmul.mubr.bf16.gmra.mxu0 %v658
    %v801 = vpop.f32.mrf.mxu0
    %v802 = vadd.f32 %v536, %v801
    %v803 = vpop.f32.mrf.mxu0
    %v804 = vpop.f32.mrf.mxu0
    %v805 = vadd.f32 %v541, %v804
    %v806 = vpop.f32.mrf.mxu0
    %807 = vmatprep.mubr.bf16.mxu0 0
    %808 = vmatmul.mubr.bf16.gmra.mxu0 %v659
    %v809 = vpop.f32.mrf.mxu0
    %v810 = vadd.f32 %v546, %v809
    %v811 = vpop.f32.mrf.mxu0
    %v812 = vpop.f32.mrf.mxu0
    %v813 = vadd.f32 %v551, %v812
    %v814 = vpop.f32.mrf.mxu0
    %815 = vmatprep.mubr.bf16.mxu0 0
    %816 = vmatmul.mubr.bf16.gmra.mxu0 %v660
    %v817 = vpop.f32.mrf.mxu0
    %v818 = vadd.f32 %v556, %v817
    %v819 = vpop.f32.mrf.mxu0
    %v820 = vpop.f32.mrf.mxu0
    %v821 = vadd.f32 %v561, %v820
    %v822 = vpop.f32.mrf.mxu0
    %823 = vmatprep.mubr.bf16.mxu0 0
    %824 = vmatmul.mubr.bf16.gmra.mxu0 %v661
    %v825 = vpop.f32.mrf.mxu0
    %v826 = vadd.f32 %v566, %v825
    %v827 = vpop.f32.mrf.mxu0
    %v828 = vpop.f32.mrf.mxu0
    %v829 = vadd.f32 %v571, %v828
    %v830 = vpop.f32.mrf.mxu0
    %831 = vmatprep.mubr.bf16.mxu0 0
    %832 = vmatmul.mubr.bf16.gmra.mxu0 %v662
    %v833 = vpop.f32.mrf.mxu0
    %v834 = vadd.f32 %v576, %v833
    %v835 = vpop.f32.mrf.mxu0
    %v836 = vpop.f32.mrf.mxu0
    %v837 = vadd.f32 %v581, %v836
    %v838 = vpop.f32.mrf.mxu0
    %839 = vdwg.mxu0
    %v840 = vmax.f32 %v714, 0.0
    %v841 = vmax.f32 %v717, 0.0
    %v842 = vmax.f32 %v722, 0.0
    %v843 = vmax.f32 %v725, 0.0
    %v844 = vmax.f32 %v730, 0.0
    %v845 = vmax.f32 %v733, 0.0
    %v846 = vmax.f32 %v738, 0.0
    %v847 = vmax.f32 %v741, 0.0
    %v848 = vmax.f32 %v746, 0.0
    %v849 = vmax.f32 %v749, 0.0
    %v850 = vmax.f32 %v754, 0.0
    %v851 = vmax.f32 %v757, 0.0
    %v852 = vmax.f32 %v762, 0.0
    %v853 = vmax.f32 %v765, 0.0
    %v854 = vmax.f32 %v770, 0.0
    %v855 = vmax.f32 %v773, 0.0
    %v856 = vmax.f32 %v778, 0.0
    %v857 = vmax.f32 %v781, 0.0
    %v858 = vmax.f32 %v786, 0.0
    %v859 = vmax.f32 %v789, 0.0
    %v860 = vmax.f32 %v794, 0.0
    %v861 = vmax.f32 %v797, 0.0
    %v862 = vmax.f32 %v802, 0.0
    %v863 = vmax.f32 %v805, 0.0
    %v864 = vmax.f32 %v810, 0.0
    %v865 = vmax.f32 %v813, 0.0
    %v866 = vmax.f32 %v818, 0.0
    %v867 = vmax.f32 %v821, 0.0
    %v868 = vmax.f32 %v826, 0.0
    %v869 = vmax.f32 %v829, 0.0
    %v870 = vmax.f32 %v834, 0.0
    %v871 = vmax.f32 %v837, 0.0
    %v872 = vld [vmem:[%s5] sm:$0xf]
    %v873 = vld [vmem:[%s6] sm:$0x3]
    %875 = vset.pattern.permute.xlu0 0
    %876 = vperm.xlu0 %875, %v873
    %v877 = vpop.permute.xlu0 %876
    %v881 = vunpack.c.l.s4 1983009808
    %v882 = vunpack.c.0.s8 %v881
    %v883 = vlaneseq
    %v884 = vshrl.u32 %v883, 7
    %v885 = vsub.s32 %v882, %v884
    %v886 = vrot.slane %v872, %v885
    %v887 = vcombine.high %v886, %v886
    %890 = vmatprep.subr.mxu0 0.0
    %891 = vmatpush1.msra.mxu0 %v855
    %892 = vmatprep.subr.mxu0 0.0
    %893 = vmatpush1.msra.mxu0 %v854
    %894 = vmatprep.subr.mxu0 0.0
    %895 = vmatpush1.msra.mxu0 %v853
    %896 = vmatprep.subr.mxu0 0.0
    %897 = vmatpush1.msra.mxu0 %v852
    %898 = vmatprep.subr.mxu0 0.0
    %899 = vmatpush1.msra.mxu0 %v851
    %900 = vmatprep.subr.mxu0 0.0
    %901 = vmatpush1.msra.mxu0 %v850
    %902 = vmatprep.subr.mxu0 0.0
    %903 = vmatpush1.msra.mxu0 %v849
    %904 = vmatprep.subr.mxu0 0.0
    %905 = vmatpush1.msra.mxu0 %v848
    %906 = vmatprep.subr.mxu0 0.0
    %907 = vmatpush1.msra.mxu0 %v847
    %908 = vmatprep.subr.mxu0 0.0
    %909 = vmatpush1.msra.mxu0 %v846
    %910 = vmatprep.subr.mxu0 0.0
    %911 = vmatpush1.msra.mxu0 %v845
    %912 = vmatprep.subr.mxu0 0.0
    %913 = vmatpush1.msra.mxu0 %v844
    %914 = vmatprep.subr.mxu0 0.0
    %915 = vmatpush1.msra.mxu0 %v843
    %916 = vmatprep.subr.mxu0 0.0
    %917 = vmatpush1.msra.mxu0 %v842
    %918 = vmatprep.subr.mxu0 0.0
    %919 = vmatpush1.msra.mxu0 %v841
    %920 = vmatprep.subr.mxu0 0.0
    %921 = vmatpush1.msra.mxu0 %v840
    %922 = vmatprep.subr.mxu0 0.0
    %923 = vmatpush2.msra.mxu0 %v871
    %924 = vmatprep.subr.mxu0 0.0
    %925 = vmatpush2.msra.mxu0 %v870
    %926 = vmatprep.subr.mxu0 0.0
    %927 = vmatpush2.msra.mxu0 %v869
    %928 = vmatprep.subr.mxu0 0.0
    %929 = vmatpush2.msra.mxu0 %v868
    %930 = vmatprep.subr.mxu0 0.0
    %931 = vmatpush2.msra.mxu0 %v867
    %932 = vmatprep.subr.mxu0 0.0
    %933 = vmatpush2.msra.mxu0 %v866
    %934 = vmatprep.subr.mxu0 0.0
    %935 = vmatpush2.msra.mxu0 %v865
    %936 = vmatprep.subr.mxu0 0.0
    %937 = vmatpush2.msra.mxu0 %v864
    %938 = vmatprep.subr.mxu0 0.0
    %939 = vmatpush2.msra.mxu0 %v863
    %940 = vmatprep.subr.mxu0 0.0
    %941 = vmatpush2.msra.mxu0 %v862
    %942 = vmatprep.subr.mxu0 0.0
    %943 = vmatpush2.msra.mxu0 %v861
    %944 = vmatprep.subr.mxu0 0.0
    %945 = vmatpush2.msra.mxu0 %v860
    %946 = vmatprep.subr.mxu0 0.0
    %947 = vmatpush2.msra.mxu0 %v859
    %948 = vmatprep.subr.mxu0 0.0
    %949 = vmatpush2.msra.mxu0 %v858
    %950 = vmatprep.subr.mxu0 0.0
    %951 = vmatpush2.msra.mxu0 %v857
    %952 = vmatprep.subr.mxu0 0.0
    %953 = vmatpush2.msra.mxu0 %v856
    %954 = vmatprep.mubr.f32.mxu0 %v887
    %955 = vmatmul.mubr.f32.gmra.mxu0 %v886
    %v956 = vpop.f32.mrf.mxu0
    %v957 = vadd.f32 %v877, %v956
    %v958 = vpop.f32.mrf.mxu0
    %959 = vdwg.mxu0
    %960 = vst [vmem:[#allocation2] sm:$0x3] %v957
    // Predicated region
    $region30: #{tpu_custom_call.1} parent=1 // pred_check
      _
    $region31: #{tpu_custom_call.1} parent=1 // pred_check_branch
      %962 = sbr.rel (0) target = $region33
    $region32: #{tpu_custom_call.1} parent=1 // pred_region
      %s964 = ssub.s32 32, 32
      %965 = vsyncadd [#allocation3], %s964
      %s967 = sshll.u32 [#allocation2], 4
      %s968 = int_to_ptr.vmem [resolvable:$true] %s967
      %970 = dma.vmem_to_hbm [thread:$0]  %s968, 32, %s7, [#allocation3]
    $region33: #{tpu_custom_call.1} parent=1 // pred_fallthru
      _
    // Predicated region
    $region34: #{tpu_custom_call.1} parent=1 // pred_check
      _
    $region35: #{tpu_custom_call.1} parent=1 // pred_check_branch
      %972 = sbr.rel (0) target = $region37
    $region36: #{tpu_custom_call.1} parent=1 // pred_region
      %973 = dma.done [#allocation3], 32
    $region37: #{tpu_custom_call.1} parent=1 // pred_fallthru
      _
    %974 = vsyncpa [#allocation3], 1

</llo_original>
